<compile_context>
chip_gen: v6e
topology: v6e:2x2x1
jax: 0.10.0
libtpu: 0.0.40
codegen_flags: <defaults>
</compile_context>

<pallas_src>
import jax
import jax.numpy as jnp
from jax.experimental import pallas as pl
from jax.experimental.pallas import tpu as pltpu


# ---------------------------------------------------------------------------
# Fused kernel:
#   h      = relu(x @ W1 + b1)                (extractor layer 1, bf16 MXU / f32 acc)
#   feat   = h @ W2 + b2                      (extractor layer 2)
#   act    = prelu(feat, alpha)               (nn.PReLU, single shared alpha)
#   logits = act @ W3 + b3                    (classifier head)
#   out    = log_softmax(logits, axis=-1)
# ---------------------------------------------------------------------------
def _classification_kernel(x_ref, w1_ref, b1_ref, w2_ref, b2_ref,
                           alpha_ref, w3_ref, b3_ref, out_ref):
    # ---- feature extractor -------------------------------------------------
    x = x_ref[...].astype(jnp.bfloat16)                       # (R, D) bf16 operands
    h = jnp.dot(x, w1_ref[...], preferred_element_type=jnp.float32)   # (R, H) f32 acc
    h = jnp.maximum(h + b1_ref[...], 0.0)                     # bias + ReLU
    feat = jnp.dot(h, w2_ref[...], preferred_element_type=jnp.float32)
    feat = feat + b2_ref[...]                                  # (R, F)

    # ---- PReLU (single learnable alpha, broadcast) --------------------------
    alpha = alpha_ref[...]                                     # (1, 1)
    act = jnp.where(feat >= 0.0, feat, feat * alpha)

    # ---- classifier head ----------------------------------------------------
    logits = jnp.dot(act, w3_ref[...], preferred_element_type=jnp.float32)
    logits = logits + b3_ref[...]                              # (R, C)

    # ---- numerically-stable log_softmax along the class axis ---------------
    m = jnp.max(logits, axis=-1, keepdims=True)
    z = logits - m
    lse = jnp.log(jnp.sum(jnp.exp(z), axis=-1, keepdims=True))
    out_ref[...] = (z - lse).astype(out_ref.dtype)


def classification_net_forward(x_nchw, params, *, block_rows=8):
    """ClassificationNet.forward: one fused pallas_call over the whole batch."""
    w1, b1, w2, b2, alpha, w3, b3 = params
    n = x_nchw.shape[0]
    d = w1.shape[0]
    c = w3.shape[1]

    x_flat = x_nchw.reshape(n, d)                              # torch.flatten(x, 1)

    # Pad rows to a multiple of block_rows (8 sublanes) so MXU/VPU tiles are full.
    n_pad = pl.cdiv(n, block_rows) * block_rows
    if n_pad != n:
        x_flat = jnp.pad(x_flat, ((0, n_pad - n), (0, 0)))

    out = pl.pallas_call(
        _classification_kernel,
        out_shape=jax.ShapeDtypeStruct((n_pad, c), jnp.float32),
        grid=(n_pad // block_rows,),
        in_specs=[
            pl.BlockSpec((block_rows, d), lambda i: (i, 0)),   # x      (R, D)
            pl.BlockSpec(w1.shape, lambda i: (0, 0)),          # W1     (D, H)  bf16
            pl.BlockSpec(b1.shape, lambda i: (0, 0)),          # b1     (1, H)
            pl.BlockSpec(w2.shape, lambda i: (0, 0)),          # W2     (H, F)
            pl.BlockSpec(b2.shape, lambda i: (0, 0)),          # b2     (1, F)
            pl.BlockSpec(alpha.shape, lambda i: (0, 0)),       # alpha  (1, 1)
            pl.BlockSpec(w3.shape, lambda i: (0, 0)),          # W3     (F, C)
            pl.BlockSpec(b3.shape, lambda i: (0, 0)),          # b3     (1, C)
        ],
        out_specs=pl.BlockSpec((block_rows, c), lambda i: (i, 0)),
        compiler_params=pltpu.CompilerParams(
            dimension_semantics=("parallel",)),                # v7x: shard rows over 2 TCs
    )(x_flat, w1, b1, w2, b2, alpha, w3, b3)

    return (out[:n],)                                          # tuple, matching PyTorch forward


def init_params(key, in_dim, hidden_dim, feature_dim, n_classes):
    """Deterministic synthetic weights (nn.Linear shapes, stored transposed)."""
    k1, k2, k3, k4, k5, k6 = jax.random.split(key, 6)
    w1 = (jax.random.normal(k1, (in_dim, hidden_dim), jnp.float32)
          * (1.0 / jnp.sqrt(in_dim))).astype(jnp.bfloat16)     # bf16: halves HBM traffic
    b1 = jax.random.normal(k2, (1, hidden_dim), jnp.float32) * 0.01
    w2 = jax.random.normal(k3, (hidden_dim, feature_dim), jnp.float32) * (1.0 / jnp.sqrt(hidden_dim))
    b2 = jax.random.normal(k4, (1, feature_dim), jnp.float32) * 0.01
    alpha = jnp.full((1, 1), 0.25, jnp.float32)                # nn.PReLU default init
    w3 = jax.random.normal(k5, (feature_dim, n_classes), jnp.float32) * (1.0 / jnp.sqrt(feature_dim))
    b3 = jax.random.normal(k6, (1, n_classes), jnp.float32) * 0.01
    return (w1, b1, w2, b2, alpha, w3, b3)


if __name__ == "__main__":
    # Small shapes consistent with an image classification forward pass.
    # Batch = 8 (multiple of 8 sublanes per the perf review), NCHW like PyTorch.
    N, C, H, W = 8, 4, 16, 16
    HIDDEN, FEATURE_DIM, N_CLASSES = 64, 32, 10
    D = C * H * W

    key = jax.random.PRNGKey(0)
    kx, kp = jax.random.split(key, 2)

    x = jax.random.normal(kx, (N, C, H, W), jnp.float32)
    params = init_params(kp, D, HIDDEN, FEATURE_DIM, N_CLASSES)

    (out,) = classification_net_forward(x, params)
    jax.block_until_ready(out)

    # Pure-JAX reference of the same fused forward (same bf16 matmul semantics).
    def ref_forward(x_nchw):
        w1, b1, w2, b2, alpha, w3, b3 = params
        xf = x_nchw.reshape(x_nchw.shape[0], -1).astype(jnp.bfloat16)
        h = jnp.maximum(jnp.dot(xf, w1, preferred_element_type=jnp.float32) + b1, 0.0)
        feat = jnp.dot(h, w2, preferred_element_type=jnp.float32) + b2
        act = jnp.where(feat >= 0.0, feat, feat * alpha)       # PReLU
        logits = jnp.dot(act, w3, preferred_element_type=jnp.float32) + b3
        return jax.nn.log_softmax(logits, axis=-1)

    ref = ref_forward(x)
    assert out.shape == (N, N_CLASSES)
    assert jnp.allclose(out, ref, atol=1e-3, rtol=1e-3)
    # Log-softmax rows must exponentiate-sum to 1.
    assert jnp.allclose(jnp.sum(jnp.exp(out), axis=-1), 1.0, atol=1e-4)

    print("KERNEL_OK")
</pallas_src>

<mosaic_0001>
module attributes {stable_mosaic.version = 11 : i64} {
  func.func @_classification_kernel(%arg0: i32, %arg1: memref<8x1024xf32, #tpu.memory_space<vmem>>, %arg2: memref<1024x64xbf16, #tpu.memory_space<vmem>>, %arg3: memref<1x64xf32, #tpu.memory_space<vmem>>, %arg4: memref<64x32xf32, #tpu.memory_space<vmem>>, %arg5: memref<1x32xf32, #tpu.memory_space<vmem>>, %arg6: memref<1x1xf32, #tpu.memory_space<vmem>>, %arg7: memref<32x10xf32, #tpu.memory_space<vmem>>, %arg8: memref<1x10xf32, #tpu.memory_space<vmem>>, %arg9: memref<8x10xf32, #tpu.memory_space<vmem>>) attributes {dimension_semantics = [#tpu.dimension_semantics<parallel>], iteration_bounds = array<i64: 1>, scalar_prefetch = 0 : i64, scratch_operands = 0 : i64, tpu.core_type = #tpu.core_type<tc>, window_params = [{transform_indices = @transform_0, window_bounds = array<i64: 8, 1024>}, {pipeline_mode = #tpu.pipeline_mode<synchronous>, transform_indices = @transform_1, window_bounds = array<i64: 1024, 64>}, {pipeline_mode = #tpu.pipeline_mode<synchronous>, transform_indices = @transform_2, window_bounds = array<i64: 1, 64>}, {pipeline_mode = #tpu.pipeline_mode<synchronous>, transform_indices = @transform_3, window_bounds = array<i64: 64, 32>}, {pipeline_mode = #tpu.pipeline_mode<synchronous>, transform_indices = @transform_4, window_bounds = array<i64: 1, 32>}, {pipeline_mode = #tpu.pipeline_mode<synchronous>, transform_indices = @transform_5, window_bounds = array<i64: 1, 1>}, {pipeline_mode = #tpu.pipeline_mode<synchronous>, transform_indices = @transform_6, window_bounds = array<i64: 32, 10>}, {pipeline_mode = #tpu.pipeline_mode<synchronous>, transform_indices = @transform_7, window_bounds = array<i64: 1, 10>}, {transform_indices = @transform_8, window_bounds = array<i64: 8, 10>}]} {
    %c0 = arith.constant 0 : index
    %c0_0 = arith.constant 0 : index
    %0 = vector.load %arg1[%c0, %c0_0] : memref<8x1024xf32, #tpu.memory_space<vmem>>, vector<8x1024xf32>
    %1 = arith.truncf %0 : vector<8x1024xf32> to vector<8x1024xbf16>
    %c0_1 = arith.constant 0 : index
    %c0_2 = arith.constant 0 : index
    %2 = vector.load %arg2[%c0_1, %c0_2] : memref<1024x64xbf16, #tpu.memory_space<vmem>>, vector<1024x64xbf16>
    %cst = arith.constant dense<0.000000e+00> : vector<8x64xf32>
    %3 = tpu.matmul %1, %2, %cst {dimension_numbers = #tpu.dot_dimension_numbers<[1], [0], [0], [1], [0, 0, 1, 1], [], []>} : vector<8x1024xbf16>, vector<1024x64xbf16>, vector<8x64xf32> -> vector<8x64xf32>
    %c0_3 = arith.constant 0 : index
    %c0_4 = arith.constant 0 : index
    %4 = vector.load %arg3[%c0_3, %c0_4] : memref<1x64xf32, #tpu.memory_space<vmem>>, vector<1x64xf32>
    %5 = vector.broadcast %4 : vector<1x64xf32> to vector<8x64xf32>
    %6 = arith.addf %3, %5 : vector<8x64xf32>
    %cst_5 = arith.constant 0.000000e+00 : f32
    %7 = vector.broadcast %cst_5 : f32 to vector<8x64xf32>
    %8 = arith.maximumf %6, %7 : vector<8x64xf32>
    %c0_6 = arith.constant 0 : index
    %c0_7 = arith.constant 0 : index
    %9 = vector.load %arg4[%c0_6, %c0_7] : memref<64x32xf32, #tpu.memory_space<vmem>>, vector<64x32xf32>
    %cst_8 = arith.constant dense<0.000000e+00> : vector<8x32xf32>
    %10 = tpu.matmul %8, %9, %cst_8 {dimension_numbers = #tpu.dot_dimension_numbers<[1], [0], [0], [1], [0, 0, 1, 1], [], []>} : vector<8x64xf32>, vector<64x32xf32>, vector<8x32xf32> -> vector<8x32xf32>
    %c0_9 = arith.constant 0 : index
    %c0_10 = arith.constant 0 : index
    %11 = vector.load %arg5[%c0_9, %c0_10] : memref<1x32xf32, #tpu.memory_space<vmem>>, vector<1x32xf32>
    %12 = vector.broadcast %11 : vector<1x32xf32> to vector<8x32xf32>
    %13 = arith.addf %10, %12 : vector<8x32xf32>
    %c0_11 = arith.constant 0 : index
    %c0_12 = arith.constant 0 : index
    %14 = vector.load %arg6[%c0_11, %c0_12] : memref<1x1xf32, #tpu.memory_space<vmem>>, vector<1x1xf32>
    %cst_13 = arith.constant 0.000000e+00 : f32
    %15 = vector.broadcast %cst_13 : f32 to vector<8x32xf32>
    %16 = arith.cmpf oge, %13, %15 : vector<8x32xf32>
    %17 = vector.broadcast %14 : vector<1x1xf32> to vector<8x32xf32>
    %18 = arith.mulf %13, %17 : vector<8x32xf32>
    %19 = arith.select %16, %13, %18 : vector<8x32xi1>, vector<8x32xf32>
    %c0_14 = arith.constant 0 : index
    %c0_15 = arith.constant 0 : index
    %20 = vector.load %arg7[%c0_14, %c0_15] : memref<32x10xf32, #tpu.memory_space<vmem>>, vector<32x10xf32>
    %cst_16 = arith.constant dense<0.000000e+00> : vector<8x10xf32>
    %21 = tpu.matmul %19, %20, %cst_16 {dimension_numbers = #tpu.dot_dimension_numbers<[1], [0], [0], [1], [0, 0, 1, 1], [], []>} : vector<8x32xf32>, vector<32x10xf32>, vector<8x10xf32> -> vector<8x10xf32>
    %c0_17 = arith.constant 0 : index
    %c0_18 = arith.constant 0 : index
    %22 = vector.load %arg8[%c0_17, %c0_18] : memref<1x10xf32, #tpu.memory_space<vmem>>, vector<1x10xf32>
    %23 = vector.broadcast %22 : vector<1x10xf32> to vector<8x10xf32>
    %24 = arith.addf %21, %23 : vector<8x10xf32>
    %cst_19 = arith.constant dense<0xFF800000> : vector<8xf32>
    %25 = vector.multi_reduction <maximumf>, %24, %cst_19 [1] : vector<8x10xf32> to vector<8xf32>
    %26 = vector.shape_cast %25 : vector<8xf32> to vector<8x1xf32>
    %27 = vector.broadcast %26 : vector<8x1xf32> to vector<8x10xf32>
    %28 = arith.subf %24, %27 : vector<8x10xf32>
    %29 = math.exp %28 : vector<8x10xf32>
    %cst_20 = arith.constant dense<0.000000e+00> : vector<8xf32>
    %30 = vector.multi_reduction <add>, %29, %cst_20 [1] : vector<8x10xf32> to vector<8xf32>
    %31 = vector.shape_cast %30 : vector<8xf32> to vector<8x1xf32>
    %32 = math.log %31 : vector<8x1xf32>
    %33 = vector.broadcast %32 : vector<8x1xf32> to vector<8x10xf32>
    %34 = arith.subf %28, %33 : vector<8x10xf32>
    %c0_21 = arith.constant 0 : index
    %c0_22 = arith.constant 0 : index
    %35 = vector.load %arg9[%c0_21, %c0_22] : memref<8x10xf32, #tpu.memory_space<vmem>>, vector<8x10xf32>
    tpu.vector_store %arg9[%c0_21, %c0_22], %34 {strides = array<i32>} : memref<8x10xf32, #tpu.memory_space<vmem>>, vector<8x10xf32>,
    return
  }
  func.func @transform_0(%arg0: i32) -> (i32, i32) {
    %c0_i32 = arith.constant 0 : i32
    %c0_i32_0 = arith.constant 0 : i32
    return %arg0, %c0_i32 : i32, i32
  }
  func.func @transform_1(%arg0: i32) -> (i32, i32) {
    %c0_i32 = arith.constant 0 : i32
    %c0_i32_0 = arith.constant 0 : i32
    %c0_i32_1 = arith.constant 0 : i32
    return %c0_i32, %c0_i32_0 : i32, i32
  }
  func.func @transform_2(%arg0: i32) -> (i32, i32) {
    %c0_i32 = arith.constant 0 : i32
    %c0_i32_0 = arith.constant 0 : i32
    %c0_i32_1 = arith.constant 0 : i32
    return %c0_i32, %c0_i32_0 : i32, i32
  }
  func.func @transform_3(%arg0: i32) -> (i32, i32) {
    %c0_i32 = arith.constant 0 : i32
    %c0_i32_0 = arith.constant 0 : i32
    %c0_i32_1 = arith.constant 0 : i32
    return %c0_i32, %c0_i32_0 : i32, i32
  }
  func.func @transform_4(%arg0: i32) -> (i32, i32) {
    %c0_i32 = arith.constant 0 : i32
    %c0_i32_0 = arith.constant 0 : i32
    %c0_i32_1 = arith.constant 0 : i32
    return %c0_i32, %c0_i32_0 : i32, i32
  }
  func.func @transform_5(%arg0: i32) -> (i32, i32) {
    %c0_i32 = arith.constant 0 : i32
    %c0_i32_0 = arith.constant 0 : i32
    %c0_i32_1 = arith.constant 0 : i32
    return %c0_i32, %c0_i32_0 : i32, i32
  }
  func.func @transform_6(%arg0: i32) -> (i32, i32) {
    %c0_i32 = arith.constant 0 : i32
    %c0_i32_0 = arith.constant 0 : i32
    %c0_i32_1 = arith.constant 0 : i32
    return %c0_i32, %c0_i32_0 : i32, i32
  }
  func.func @transform_7(%arg0: i32) -> (i32, i32) {
    %c0_i32 = arith.constant 0 : i32
    %c0_i32_0 = arith.constant 0 : i32
    %c0_i32_1 = arith.constant 0 : i32
    return %c0_i32, %c0_i32_0 : i32, i32
  }
  func.func @transform_8(%arg0: i32) -> (i32, i32) {
    %c0_i32 = arith.constant 0 : i32
    %c0_i32_0 = arith.constant 0 : i32
    return %arg0, %c0_i32 : i32, i32
  }
}

</mosaic_0001>

<llo_original>
// kernel: tpu_custom_call.1
$region0: #{tpu_custom_call.1}
  #allocation0 [shape = 'u32[]', space=smem, size = 0x4, offset = 0x4, fixed_abs, tag = 'smem constant byte address 0x4 - core index']
  #allocation1 [shape = 'u32[144,128]{1,0:T(1,128)}', space=vmem, size = 0x12000, scoped, tag = 'internal scratch']
  #allocation2 [shape = 'f32[1,1]{1,0:T(1,128)S(1)}', space=vmem, size = 0x200, scoped, tag = 'scoped memory for tpu_custom_call.1']
  %s0 = inlined_call_operand.vmem [shape: f32[8,1024], index: 0, kind: input, shape index: {}]
  %s1 = inlined_call_operand.vmem [shape: bf16[1024,64], index: 1, kind: input, shape index: {}]
  %s2 = inlined_call_operand.vmem [shape: f32[1,64], index: 2, kind: input, shape index: {}]
  %s3 = inlined_call_operand.vmem [shape: f32[64,32], index: 3, kind: input, shape index: {}]
  %s4 = inlined_call_operand.vmem [shape: f32[1,32], index: 4, kind: input, shape index: {}]
  %s5 = inlined_call_operand.<no memory space> [shape: f32[1,1], index: 5, kind: input, shape index: {}]
  %s6 = inlined_call_operand.vmem [shape: f32[32,10], index: 6, kind: input, shape index: {}]
  %s7 = inlined_call_operand.vmem [shape: f32[1,10], index: 7, kind: input, shape index: {}]
  %s8 = inlined_call_operand.hbm [shape: f32[8,10], index: 8, kind: output, shape index: {}]
  %s9 = sld [smem:[#allocation0]]
  $region42: #{tpu_custom_call.1} parent=0
    _
  %s11 = ssub.s32 1, %s9
  %s12 = scalar_select 0, %s11, %s9
  %v13 = vstv %s5
  %14 = vst [vmem:[#allocation2] sm:$0x1] %v13
  $region1: #{tpu_custom_call.1} parent=0
    #allocation3 [shape = 'u8[4096]{0}', space=vmem, size = 0x1000, scoped, tag = 'output window, operand 0, single buffered']
    #allocation4 [shape = 's32[1]{0}', space=sflag, size = 0x4, scoped, tag = 'scoped memory for tpu_custom_call.1']
    %15 = vsyncpa [#allocation4], 0
    // Predicated region
    $region2: #{tpu_custom_call.1} parent=1 // pred_check
      _
    $region3: #{tpu_custom_call.1} parent=1 // pred_check_branch
      %17 = sbr.rel (0) target = $region5
    $region4: #{tpu_custom_call.1} parent=1 // pred_region
      _
    $region5: #{tpu_custom_call.1} parent=1 // pred_fallthru
      _
    // Predicated region
    $region6: #{tpu_custom_call.1} parent=1 // pred_check
      _
    $region7: #{tpu_custom_call.1} parent=1 // pred_check_branch
      %19 = sbr.rel (0) target = $region9
    $region8: #{tpu_custom_call.1} parent=1 // pred_region
      _
    $region9: #{tpu_custom_call.1} parent=1 // pred_fallthru
      _
    // Predicated region
    $region10: #{tpu_custom_call.1} parent=1 // pred_check
      _
    $region11: #{tpu_custom_call.1} parent=1 // pred_check_branch
      %21 = sbr.rel (0) target = $region13
    $region12: #{tpu_custom_call.1} parent=1 // pred_region
      _
    $region13: #{tpu_custom_call.1} parent=1 // pred_fallthru
      _
    // Predicated region
    $region14: #{tpu_custom_call.1} parent=1 // pred_check
      _
    $region15: #{tpu_custom_call.1} parent=1 // pred_check_branch
      %23 = sbr.rel (0) target = $region17
    $region16: #{tpu_custom_call.1} parent=1 // pred_region
      _
    $region17: #{tpu_custom_call.1} parent=1 // pred_fallthru
      _
    // Predicated region
    $region18: #{tpu_custom_call.1} parent=1 // pred_check
      _
    $region19: #{tpu_custom_call.1} parent=1 // pred_check_branch
      %25 = sbr.rel (0) target = $region21
    $region20: #{tpu_custom_call.1} parent=1 // pred_region
      _
    $region21: #{tpu_custom_call.1} parent=1 // pred_fallthru
      _
    // Predicated region
    $region22: #{tpu_custom_call.1} parent=1 // pred_check
      _
    $region23: #{tpu_custom_call.1} parent=1 // pred_check_branch
      %27 = sbr.rel (0) target = $region25
    $region24: #{tpu_custom_call.1} parent=1 // pred_region
      _
    $region25: #{tpu_custom_call.1} parent=1 // pred_fallthru
      _
    // Predicated region
    $region26: #{tpu_custom_call.1} parent=1 // pred_check
      _
    $region27: #{tpu_custom_call.1} parent=1 // pred_check_branch
      %29 = sbr.rel (0) target = $region29
    $region28: #{tpu_custom_call.1} parent=1 // pred_region
      _
    $region29: #{tpu_custom_call.1} parent=1 // pred_fallthru
      _
    // Predicated region
    $region30: #{tpu_custom_call.1} parent=1 // pred_check
      _
    $region31: #{tpu_custom_call.1} parent=1 // pred_check_branch
      %31 = sbr.rel (0) target = $region33
    $region32: #{tpu_custom_call.1} parent=1 // pred_region
      _
    $region33: #{tpu_custom_call.1} parent=1 // pred_fallthru
      _
    %v33 = vld [vmem:[%s0] sm:$0xff]
    %v34 = vld [vmem:[%s0 + $0x8] sm:$0xff]
    %v35 = vld [vmem:[%s0 + $0x10] sm:$0xff]
    %v36 = vld [vmem:[%s0 + $0x18] sm:$0xff]
    %v37 = vld [vmem:[%s0 + $0x20] sm:$0xff]
    %v38 = vld [vmem:[%s0 + $0x28] sm:$0xff]
    %v39 = vld [vmem:[%s0 + $0x30] sm:$0xff]
    %v40 = vld [vmem:[%s0 + $0x38] sm:$0xff]
    %v41 = vpack.c.bf16 %v33, %v33
    %v42 = vpack.c.bf16 %v34, %v34
    %v43 = vpack.c.bf16 %v35, %v35
    %v44 = vpack.c.bf16 %v36, %v36
    %v45 = vpack.c.bf16 %v37, %v37
    %v46 = vpack.c.bf16 %v38, %v38
    %v47 = vpack.c.bf16 %v39, %v39
    %v48 = vpack.c.bf16 %v40, %v40
    %v49 = vld [vmem:[%s1] sm:$0xf]
    %v50 = vld [vmem:[%s1 + $0x4] sm:$0xf]
    %v51 = vld [vmem:[%s1 + $0x8] sm:$0xf]
    %v52 = vld [vmem:[%s1 + $0xc] sm:$0xf]
    %v53 = vld [vmem:[%s1 + $0x10] sm:$0xf]
    %v54 = vld [vmem:[%s1 + $0x14] sm:$0xf]
    %v55 = vld [vmem:[%s1 + $0x18] sm:$0xf]
    %v56 = vld [vmem:[%s1 + $0x1c] sm:$0xf]
    %v57 = vld [vmem:[%s1 + $0x20] sm:$0xf]
    %v58 = vld [vmem:[%s1 + $0x24] sm:$0xf]
    %v59 = vld [vmem:[%s1 + $0x28] sm:$0xf]
    %v60 = vld [vmem:[%s1 + $0x2c] sm:$0xf]
    %v61 = vld [vmem:[%s1 + $0x30] sm:$0xf]
    %v62 = vld [vmem:[%s1 + $0x34] sm:$0xf]
    %v63 = vld [vmem:[%s1 + $0x38] sm:$0xf]
    %v64 = vld [vmem:[%s1 + $0x3c] sm:$0xf]
    %v65 = vld [vmem:[%s1 + $0x40] sm:$0xf]
    %v66 = vld [vmem:[%s1 + $0x44] sm:$0xf]
    %v67 = vld [vmem:[%s1 + $0x48] sm:$0xf]
    %v68 = vld [vmem:[%s1 + $0x4c] sm:$0xf]
    %v69 = vld [vmem:[%s1 + $0x50] sm:$0xf]
    %v70 = vld [vmem:[%s1 + $0x54] sm:$0xf]
    %v71 = vld [vmem:[%s1 + $0x58] sm:$0xf]
    %v72 = vld [vmem:[%s1 + $0x5c] sm:$0xf]
    %v73 = vld [vmem:[%s1 + $0x60] sm:$0xf]
    %v74 = vld [vmem:[%s1 + $0x64] sm:$0xf]
    %v75 = vld [vmem:[%s1 + $0x68] sm:$0xf]
    %v76 = vld [vmem:[%s1 + $0x6c] sm:$0xf]
    %v77 = vld [vmem:[%s1 + $0x70] sm:$0xf]
    %v78 = vld [vmem:[%s1 + $0x74] sm:$0xf]
    %v79 = vld [vmem:[%s1 + $0x78] sm:$0xf]
    %v80 = vld [vmem:[%s1 + $0x7c] sm:$0xf]
    %v81 = vld [vmem:[%s1 + $0x80] sm:$0xf]
    %v82 = vld [vmem:[%s1 + $0x84] sm:$0xf]
    %v83 = vld [vmem:[%s1 + $0x88] sm:$0xf]
    %v84 = vld [vmem:[%s1 + $0x8c] sm:$0xf]
    %v85 = vld [vmem:[%s1 + $0x90] sm:$0xf]
    %v86 = vld [vmem:[%s1 + $0x94] sm:$0xf]
    %v87 = vld [vmem:[%s1 + $0x98] sm:$0xf]
    %v88 = vld [vmem:[%s1 + $0x9c] sm:$0xf]
    %v89 = vld [vmem:[%s1 + $0xa0] sm:$0xf]
    %v90 = vld [vmem:[%s1 + $0xa4] sm:$0xf]
    %v91 = vld [vmem:[%s1 + $0xa8] sm:$0xf]
    %v92 = vld [vmem:[%s1 + $0xac] sm:$0xf]
    %v93 = vld [vmem:[%s1 + $0xb0] sm:$0xf]
    %v94 = vld [vmem:[%s1 + $0xb4] sm:$0xf]
    %v95 = vld [vmem:[%s1 + $0xb8] sm:$0xf]
    %v96 = vld [vmem:[%s1 + $0xbc] sm:$0xf]
    %v97 = vld [vmem:[%s1 + $0xc0] sm:$0xf]
    %v98 = vld [vmem:[%s1 + $0xc4] sm:$0xf]
    %v99 = vld [vmem:[%s1 + $0xc8] sm:$0xf]
    %v100 = vld [vmem:[%s1 + $0xcc] sm:$0xf]
    %v101 = vld [vmem:[%s1 + $0xd0] sm:$0xf]
    %v102 = vld [vmem:[%s1 + $0xd4] sm:$0xf]
    %v103 = vld [vmem:[%s1 + $0xd8] sm:$0xf]
    %v104 = vld [vmem:[%s1 + $0xdc] sm:$0xf]
    %v105 = vld [vmem:[%s1 + $0xe0] sm:$0xf]
    %v106 = vld [vmem:[%s1 + $0xe4] sm:$0xf]
    %v107 = vld [vmem:[%s1 + $0xe8] sm:$0xf]
    %v108 = vld [vmem:[%s1 + $0xec] sm:$0xf]
    %v109 = vld [vmem:[%s1 + $0xf0] sm:$0xf]
    %v110 = vld [vmem:[%s1 + $0xf4] sm:$0xf]
    %v111 = vld [vmem:[%s1 + $0xf8] sm:$0xf]
    %v112 = vld [vmem:[%s1 + $0xfc] sm:$0xf]
    %v113 = vld [vmem:[%s1 + $0x100] sm:$0xf]
    %v114 = vld [vmem:[%s1 + $0x104] sm:$0xf]
    %v115 = vld [vmem:[%s1 + $0x108] sm:$0xf]
    %v116 = vld [vmem:[%s1 + $0x10c] sm:$0xf]
    %v117 = vld [vmem:[%s1 + $0x110] sm:$0xf]
    %v118 = vld [vmem:[%s1 + $0x114] sm:$0xf]
    %v119 = vld [vmem:[%s1 + $0x118] sm:$0xf]
    %v120 = vld [vmem:[%s1 + $0x11c] sm:$0xf]
    %v121 = vld [vmem:[%s1 + $0x120] sm:$0xf]
    %v122 = vld [vmem:[%s1 + $0x124] sm:$0xf]
    %v123 = vld [vmem:[%s1 + $0x128] sm:$0xf]
    %v124 = vld [vmem:[%s1 + $0x12c] sm:$0xf]
    %v125 = vld [vmem:[%s1 + $0x130] sm:$0xf]
    %v126 = vld [vmem:[%s1 + $0x134] sm:$0xf]
    %v127 = vld [vmem:[%s1 + $0x138] sm:$0xf]
    %v128 = vld [vmem:[%s1 + $0x13c] sm:$0xf]
    %v129 = vld [vmem:[%s1 + $0x140] sm:$0xf]
    %v130 = vld [vmem:[%s1 + $0x144] sm:$0xf]
    %v131 = vld [vmem:[%s1 + $0x148] sm:$0xf]
    %v132 = vld [vmem:[%s1 + $0x14c] sm:$0xf]
    %v133 = vld [vmem:[%s1 + $0x150] sm:$0xf]
    %v134 = vld [vmem:[%s1 + $0x154] sm:$0xf]
    %v135 = vld [vmem:[%s1 + $0x158] sm:$0xf]
    %v136 = vld [vmem:[%s1 + $0x15c] sm:$0xf]
    %v137 = vld [vmem:[%s1 + $0x160] sm:$0xf]
    %v138 = vld [vmem:[%s1 + $0x164] sm:$0xf]
    %v139 = vld [vmem:[%s1 + $0x168] sm:$0xf]
    %v140 = vld [vmem:[%s1 + $0x16c] sm:$0xf]
    %v141 = vld [vmem:[%s1 + $0x170] sm:$0xf]
    %v142 = vld [vmem:[%s1 + $0x174] sm:$0xf]
    %v143 = vld [vmem:[%s1 + $0x178] sm:$0xf]
    %v144 = vld [vmem:[%s1 + $0x17c] sm:$0xf]
    %v145 = vld [vmem:[%s1 + $0x180] sm:$0xf]
    %v146 = vld [vmem:[%s1 + $0x184] sm:$0xf]
    %v147 = vld [vmem:[%s1 + $0x188] sm:$0xf]
    %v148 = vld [vmem:[%s1 + $0x18c] sm:$0xf]
    %v149 = vld [vmem:[%s1 + $0x190] sm:$0xf]
    %v150 = vld [vmem:[%s1 + $0x194] sm:$0xf]
    %v151 = vld [vmem:[%s1 + $0x198] sm:$0xf]
    %v152 = vld [vmem:[%s1 + $0x19c] sm:$0xf]
    %v153 = vld [vmem:[%s1 + $0x1a0] sm:$0xf]
    %v154 = vld [vmem:[%s1 + $0x1a4] sm:$0xf]
    %v155 = vld [vmem:[%s1 + $0x1a8] sm:$0xf]
    %v156 = vld [vmem:[%s1 + $0x1ac] sm:$0xf]
    %v157 = vld [vmem:[%s1 + $0x1b0] sm:$0xf]
    %v158 = vld [vmem:[%s1 + $0x1b4] sm:$0xf]
    %v159 = vld [vmem:[%s1 + $0x1b8] sm:$0xf]
    %v160 = vld [vmem:[%s1 + $0x1bc] sm:$0xf]
    %v161 = vld [vmem:[%s1 + $0x1c0] sm:$0xf]
    %v162 = vld [vmem:[%s1 + $0x1c4] sm:$0xf]
    %v163 = vld [vmem:[%s1 + $0x1c8] sm:$0xf]
    %v164 = vld [vmem:[%s1 + $0x1cc] sm:$0xf]
    %v165 = vld [vmem:[%s1 + $0x1d0] sm:$0xf]
    %v166 = vld [vmem:[%s1 + $0x1d4] sm:$0xf]
    %v167 = vld [vmem:[%s1 + $0x1d8] sm:$0xf]
    %v168 = vld [vmem:[%s1 + $0x1dc] sm:$0xf]
    %v169 = vld [vmem:[%s1 + $0x1e0] sm:$0xf]
    %v170 = vld [vmem:[%s1 + $0x1e4] sm:$0xf]
    %v171 = vld [vmem:[%s1 + $0x1e8] sm:$0xf]
    %v172 = vld [vmem:[%s1 + $0x1ec] sm:$0xf]
    %v173 = vld [vmem:[%s1 + $0x1f0] sm:$0xf]
    %v174 = vld [vmem:[%s1 + $0x1f4] sm:$0xf]
    %v175 = vld [vmem:[%s1 + $0x1f8] sm:$0xf]
    %v176 = vld [vmem:[%s1 + $0x1fc] sm:$0xf]
    %v177 = vld [vmem:[%s2] sm:$0x1]
    %v179 = vlaneseq
    %v180 = vshrl.u32 %v179, 7
    %v181 = vsub.s32 0, %v180
    %v182 = vrot.slane %v177, %v181
    %v312 = vunpack.c.l.b16 %v49
    %v313 = vunpack.c.l.b16 %v50
    %v314 = vunpack.c.l.b16 %v51
    %v315 = vunpack.c.l.b16 %v52
    %v316 = vunpack.c.l.b16 %v53
    %v317 = vunpack.c.l.b16 %v54
    %v318 = vunpack.c.l.b16 %v55
    %v319 = vunpack.c.l.b16 %v56
    %v320 = vunpack.c.l.b16 %v57
    %v321 = vunpack.c.l.b16 %v58
    %v322 = vunpack.c.l.b16 %v59
    %v323 = vunpack.c.l.b16 %v60
    %v324 = vunpack.c.l.b16 %v61
    %v325 = vunpack.c.l.b16 %v62
    %v326 = vunpack.c.l.b16 %v63
    %v327 = vunpack.c.l.b16 %v64
    %v328 = vunpack.c.l.b16 %v65
    %v329 = vunpack.c.l.b16 %v66
    %v330 = vunpack.c.l.b16 %v67
    %v331 = vunpack.c.l.b16 %v68
    %v332 = vunpack.c.l.b16 %v69
    %v333 = vunpack.c.l.b16 %v70
    %v334 = vunpack.c.l.b16 %v71
    %v335 = vunpack.c.l.b16 %v72
    %v336 = vunpack.c.l.b16 %v73
    %v337 = vunpack.c.l.b16 %v74
    %v338 = vunpack.c.l.b16 %v75
    %v339 = vunpack.c.l.b16 %v76
    %v340 = vunpack.c.l.b16 %v77
    %v341 = vunpack.c.l.b16 %v78
    %v342 = vunpack.c.l.b16 %v79
    %v343 = vunpack.c.l.b16 %v80
    %v344 = vunpack.c.l.b16 %v81
    %v345 = vunpack.c.l.b16 %v82
    %v346 = vunpack.c.l.b16 %v83
    %v347 = vunpack.c.l.b16 %v84
    %v348 = vunpack.c.l.b16 %v85
    %v349 = vunpack.c.l.b16 %v86
    %v350 = vunpack.c.l.b16 %v87
    %v351 = vunpack.c.l.b16 %v88
    %v352 = vunpack.c.l.b16 %v89
    %v353 = vunpack.c.l.b16 %v90
    %v354 = vunpack.c.l.b16 %v91
    %v355 = vunpack.c.l.b16 %v92
    %v356 = vunpack.c.l.b16 %v93
    %v357 = vunpack.c.l.b16 %v94
    %v358 = vunpack.c.l.b16 %v95
    %v359 = vunpack.c.l.b16 %v96
    %v360 = vunpack.c.l.b16 %v97
    %v361 = vunpack.c.l.b16 %v98
    %v362 = vunpack.c.l.b16 %v99
    %v363 = vunpack.c.l.b16 %v100
    %v364 = vunpack.c.l.b16 %v101
    %v365 = vunpack.c.l.b16 %v102
    %v366 = vunpack.c.l.b16 %v103
    %v367 = vunpack.c.l.b16 %v104
    %v368 = vunpack.c.l.b16 %v105
    %v369 = vunpack.c.l.b16 %v106
    %v370 = vunpack.c.l.b16 %v107
    %v371 = vunpack.c.l.b16 %v108
    %v372 = vunpack.c.l.b16 %v109
    %v373 = vunpack.c.l.b16 %v110
    %v374 = vunpack.c.l.b16 %v111
    %v375 = vunpack.c.l.b16 %v112
    %v376 = vunpack.c.l.b16 %v113
    %v377 = vunpack.c.l.b16 %v114
    %v378 = vunpack.c.l.b16 %v115
    %v379 = vunpack.c.l.b16 %v116
    %v380 = vunpack.c.l.b16 %v117
    %v381 = vunpack.c.l.b16 %v118
    %v382 = vunpack.c.l.b16 %v119
    %v383 = vunpack.c.l.b16 %v120
    %v384 = vunpack.c.l.b16 %v121
    %v385 = vunpack.c.l.b16 %v122
    %v386 = vunpack.c.l.b16 %v123
    %v387 = vunpack.c.l.b16 %v124
    %v388 = vunpack.c.l.b16 %v125
    %v389 = vunpack.c.l.b16 %v126
    %v390 = vunpack.c.l.b16 %v127
    %v391 = vunpack.c.l.b16 %v128
    %v392 = vunpack.c.l.b16 %v129
    %v393 = vunpack.c.l.b16 %v130
    %v394 = vunpack.c.l.b16 %v131
    %v395 = vunpack.c.l.b16 %v132
    %v396 = vunpack.c.l.b16 %v133
    %v397 = vunpack.c.l.b16 %v134
    %v398 = vunpack.c.l.b16 %v135
    %v399 = vunpack.c.l.b16 %v136
    %v400 = vunpack.c.l.b16 %v137
    %v401 = vunpack.c.l.b16 %v138
    %v402 = vunpack.c.l.b16 %v139
    %v403 = vunpack.c.l.b16 %v140
    %v404 = vunpack.c.l.b16 %v141
    %v405 = vunpack.c.l.b16 %v142
    %v406 = vunpack.c.l.b16 %v143
    %v407 = vunpack.c.l.b16 %v144
    %v408 = vunpack.c.l.b16 %v145
    %v409 = vunpack.c.l.b16 %v146
    %v410 = vunpack.c.l.b16 %v147
    %v411 = vunpack.c.l.b16 %v148
    %v412 = vunpack.c.l.b16 %v149
    %v413 = vunpack.c.l.b16 %v150
    %v414 = vunpack.c.l.b16 %v151
    %v415 = vunpack.c.l.b16 %v152
    %v416 = vunpack.c.l.b16 %v153
    %v417 = vunpack.c.l.b16 %v154
    %v418 = vunpack.c.l.b16 %v155
    %v419 = vunpack.c.l.b16 %v156
    %v420 = vunpack.c.l.b16 %v157
    %v421 = vunpack.c.l.b16 %v158
    %v422 = vunpack.c.l.b16 %v159
    %v423 = vunpack.c.l.b16 %v160
    %v424 = vunpack.c.l.b16 %v161
    %v425 = vunpack.c.l.b16 %v162
    %v426 = vunpack.c.l.b16 %v163
    %v427 = vunpack.c.l.b16 %v164
    %v428 = vunpack.c.l.b16 %v165
    %v429 = vunpack.c.l.b16 %v166
    %v430 = vunpack.c.l.b16 %v167
    %v431 = vunpack.c.l.b16 %v168
    %v432 = vunpack.c.l.b16 %v169
    %v433 = vunpack.c.l.b16 %v170
    %v434 = vunpack.c.l.b16 %v171
    %v435 = vunpack.c.l.b16 %v172
    %v436 = vunpack.c.l.b16 %v173
    %v437 = vunpack.c.l.b16 %v174
    %v438 = vunpack.c.l.b16 %v175
    %v439 = vunpack.c.l.b16 %v176
    %v440 = vpack.c.b16 %v313, %v312
    %v441 = vpack.c.b16 %v315, %v314
    %v442 = vpack.c.b16 %v317, %v316
    %v443 = vpack.c.b16 %v319, %v318
    %v444 = vpack.c.b16 %v321, %v320
    %v445 = vpack.c.b16 %v323, %v322
    %v446 = vpack.c.b16 %v325, %v324
    %v447 = vpack.c.b16 %v327, %v326
    %v448 = vpack.c.b16 %v329, %v328
    %v449 = vpack.c.b16 %v331, %v330
    %v450 = vpack.c.b16 %v333, %v332
    %v451 = vpack.c.b16 %v335, %v334
    %v452 = vpack.c.b16 %v337, %v336
    %v453 = vpack.c.b16 %v339, %v338
    %v454 = vpack.c.b16 %v341, %v340
    %v455 = vpack.c.b16 %v343, %v342
    %v456 = vpack.c.b16 %v345, %v344
    %v457 = vpack.c.b16 %v347, %v346
    %v458 = vpack.c.b16 %v349, %v348
    %v459 = vpack.c.b16 %v351, %v350
    %v460 = vpack.c.b16 %v353, %v352
    %v461 = vpack.c.b16 %v355, %v354
    %v462 = vpack.c.b16 %v357, %v356
    %v463 = vpack.c.b16 %v359, %v358
    %v464 = vpack.c.b16 %v361, %v360
    %v465 = vpack.c.b16 %v363, %v362
    %v466 = vpack.c.b16 %v365, %v364
    %v467 = vpack.c.b16 %v367, %v366
    %v468 = vpack.c.b16 %v369, %v368
    %v469 = vpack.c.b16 %v371, %v370
    %v470 = vpack.c.b16 %v373, %v372
    %v471 = vpack.c.b16 %v375, %v374
    %v472 = vpack.c.b16 %v377, %v376
    %v473 = vpack.c.b16 %v379, %v378
    %v474 = vpack.c.b16 %v381, %v380
    %v475 = vpack.c.b16 %v383, %v382
    %v476 = vpack.c.b16 %v385, %v384
    %v477 = vpack.c.b16 %v387, %v386
    %v478 = vpack.c.b16 %v389, %v388
    %v479 = vpack.c.b16 %v391, %v390
    %v480 = vpack.c.b16 %v393, %v392
    %v481 = vpack.c.b16 %v395, %v394
    %v482 = vpack.c.b16 %v397, %v396
    %v483 = vpack.c.b16 %v399, %v398
    %v484 = vpack.c.b16 %v401, %v400
    %v485 = vpack.c.b16 %v403, %v402
    %v486 = vpack.c.b16 %v405, %v404
    %v487 = vpack.c.b16 %v407, %v406
    %v488 = vpack.c.b16 %v409, %v408
    %v489 = vpack.c.b16 %v411, %v410
    %v490 = vpack.c.b16 %v413, %v412
    %v491 = vpack.c.b16 %v415, %v414
    %v492 = vpack.c.b16 %v417, %v416
    %v493 = vpack.c.b16 %v419, %v418
    %v494 = vpack.c.b16 %v421, %v420
    %v495 = vpack.c.b16 %v423, %v422
    %v496 = vpack.c.b16 %v425, %v424
    %v497 = vpack.c.b16 %v427, %v426
    %v498 = vpack.c.b16 %v429, %v428
    %v499 = vpack.c.b16 %v431, %v430
    %v500 = vpack.c.b16 %v433, %v432
    %v501 = vpack.c.b16 %v435, %v434
    %v502 = vpack.c.b16 %v437, %v436
    %v503 = vpack.c.b16 %v439, %v438
    %568 = vmatprep.subr.bf16.mxu0 0
    %569 = vmatpush1.bf16.msra.mxu0 %v447
    %570 = vmatprep.subr.bf16.mxu0 0
    %571 = vmatpush1.bf16.msra.mxu0 %v446
    %572 = vmatprep.subr.bf16.mxu0 0
    %573 = vmatpush1.bf16.msra.mxu0 %v445
    %574 = vmatprep.subr.bf16.mxu0 0
    %575 = vmatpush1.bf16.msra.mxu0 %v444
    %576 = vmatprep.subr.bf16.mxu0 0
    %577 = vmatpush1.bf16.msra.mxu0 %v443
    %578 = vmatprep.subr.bf16.mxu0 0
    %579 = vmatpush1.bf16.msra.mxu0 %v442
    %580 = vmatprep.subr.bf16.mxu0 0
    %581 = vmatpush1.bf16.msra.mxu0 %v441
    %582 = vmatprep.subr.bf16.mxu0 0
    %583 = vmatpush1.bf16.msra.mxu0 %v440
    %584 = vmatprep.subr.bf16.mxu0 0
    %585 = vmatpush2.bf16.msra.mxu0 %v455
    %586 = vmatprep.subr.bf16.mxu0 0
    %587 = vmatpush2.bf16.msra.mxu0 %v454
    %588 = vmatprep.subr.bf16.mxu0 0
    %589 = vmatpush2.bf16.msra.mxu0 %v453
    %590 = vmatprep.subr.bf16.mxu0 0
    %591 = vmatpush2.bf16.msra.mxu0 %v452
    %592 = vmatprep.subr.bf16.mxu0 0
    %593 = vmatpush2.bf16.msra.mxu0 %v451
    %594 = vmatprep.subr.bf16.mxu0 0
    %595 = vmatpush2.bf16.msra.mxu0 %v450
    %596 = vmatprep.subr.bf16.mxu0 0
    %597 = vmatpush2.bf16.msra.mxu0 %v449
    %598 = vmatprep.subr.bf16.mxu0 0
    %599 = vmatpush2.bf16.msra.mxu0 %v448
    %600 = vmatprep.mubr.bf16.mxu0 %v42
    %601 = vmatmul.mubr.bf16.gmra.mxu0 %v41
    %v602 = vpop.f32.mrf.mxu0
    %v603 = vadd.f32 %v182, %v602
    %v604 = vpop.f32.mrf.mxu0
    %v605 = vpop.f32.mrf.mxu0
    %v606 = vpop.f32.mrf.mxu0
    %607 = vdwg.mxu0
    %608 = vmatprep.subr.bf16.mxu0 0
    %609 = vmatpush1.bf16.msra.mxu0 %v463
    %610 = vmatprep.subr.bf16.mxu0 0
    %611 = vmatpush1.bf16.msra.mxu0 %v462
    %612 = vmatprep.subr.bf16.mxu0 0
    %613 = vmatpush1.bf16.msra.mxu0 %v461
    %614 = vmatprep.subr.bf16.mxu0 0
    %615 = vmatpush1.bf16.msra.mxu0 %v460
    %616 = vmatprep.subr.bf16.mxu0 0
    %617 = vmatpush1.bf16.msra.mxu0 %v459
    %618 = vmatprep.subr.bf16.mxu0 0
    %619 = vmatpush1.bf16.msra.mxu0 %v458
    %620 = vmatprep.subr.bf16.mxu0 0
    %621 = vmatpush1.bf16.msra.mxu0 %v457
    %622 = vmatprep.subr.bf16.mxu0 0
    %623 = vmatpush1.bf16.msra.mxu0 %v456
    %624 = vmatprep.subr.bf16.mxu0 0
    %625 = vmatpush2.bf16.msra.mxu0 %v471
    %626 = vmatprep.subr.bf16.mxu0 0
    %627 = vmatpush2.bf16.msra.mxu0 %v470
    %628 = vmatprep.subr.bf16.mxu0 0
    %629 = vmatpush2.bf16.msra.mxu0 %v469
    %630 = vmatprep.subr.bf16.mxu0 0
    %631 = vmatpush2.bf16.msra.mxu0 %v468
    %632 = vmatprep.subr.bf16.mxu0 0
    %633 = vmatpush2.bf16.msra.mxu0 %v467
    %634 = vmatprep.subr.bf16.mxu0 0
    %635 = vmatpush2.bf16.msra.mxu0 %v466
    %636 = vmatprep.subr.bf16.mxu0 0
    %637 = vmatpush2.bf16.msra.mxu0 %v465
    %638 = vmatprep.subr.bf16.mxu0 0
    %639 = vmatpush2.bf16.msra.mxu0 %v464
    %640 = vmatprep.mubr.bf16.mxu0 %v44
    %641 = vmatmul.mubr.bf16.gmra.mxu0 %v43
    %v642 = vpop.f32.mrf.mxu0
    %v643 = vadd.f32 %v603, %v642
    %v644 = vpop.f32.mrf.mxu0
    %v645 = vpop.f32.mrf.mxu0
    %v646 = vpop.f32.mrf.mxu0
    %647 = vdwg.mxu0
    %648 = vmatprep.subr.bf16.mxu0 0
    %649 = vmatpush1.bf16.msra.mxu0 %v479
    %650 = vmatprep.subr.bf16.mxu0 0
    %651 = vmatpush1.bf16.msra.mxu0 %v478
    %652 = vmatprep.subr.bf16.mxu0 0
    %653 = vmatpush1.bf16.msra.mxu0 %v477
    %654 = vmatprep.subr.bf16.mxu0 0
    %655 = vmatpush1.bf16.msra.mxu0 %v476
    %656 = vmatprep.subr.bf16.mxu0 0
    %657 = vmatpush1.bf16.msra.mxu0 %v475
    %658 = vmatprep.subr.bf16.mxu0 0
    %659 = vmatpush1.bf16.msra.mxu0 %v474
    %660 = vmatprep.subr.bf16.mxu0 0
    %661 = vmatpush1.bf16.msra.mxu0 %v473
    %662 = vmatprep.subr.bf16.mxu0 0
    %663 = vmatpush1.bf16.msra.mxu0 %v472
    %664 = vmatprep.subr.bf16.mxu0 0
    %665 = vmatpush2.bf16.msra.mxu0 %v487
    %666 = vmatprep.subr.bf16.mxu0 0
    %667 = vmatpush2.bf16.msra.mxu0 %v486
    %668 = vmatprep.subr.bf16.mxu0 0
    %669 = vmatpush2.bf16.msra.mxu0 %v485
    %670 = vmatprep.subr.bf16.mxu0 0
    %671 = vmatpush2.bf16.msra.mxu0 %v484
    %672 = vmatprep.subr.bf16.mxu0 0
    %673 = vmatpush2.bf16.msra.mxu0 %v483
    %674 = vmatprep.subr.bf16.mxu0 0
    %675 = vmatpush2.bf16.msra.mxu0 %v482
    %676 = vmatprep.subr.bf16.mxu0 0
    %677 = vmatpush2.bf16.msra.mxu0 %v481
    %678 = vmatprep.subr.bf16.mxu0 0
    %679 = vmatpush2.bf16.msra.mxu0 %v480
    %680 = vmatprep.mubr.bf16.mxu0 %v46
    %681 = vmatmul.mubr.bf16.gmra.mxu0 %v45
    %v682 = vpop.f32.mrf.mxu0
    %v683 = vadd.f32 %v643, %v682
    %v684 = vpop.f32.mrf.mxu0
    %v685 = vpop.f32.mrf.mxu0
    %v686 = vpop.f32.mrf.mxu0
    %687 = vdwg.mxu0
    %688 = vmatprep.subr.bf16.mxu0 0
    %689 = vmatpush1.bf16.msra.mxu0 %v495
    %690 = vmatprep.subr.bf16.mxu0 0
    %691 = vmatpush1.bf16.msra.mxu0 %v494
    %692 = vmatprep.subr.bf16.mxu0 0
    %693 = vmatpush1.bf16.msra.mxu0 %v493
    %694 = vmatprep.subr.bf16.mxu0 0
    %695 = vmatpush1.bf16.msra.mxu0 %v492
    %696 = vmatprep.subr.bf16.mxu0 0
    %697 = vmatpush1.bf16.msra.mxu0 %v491
    %698 = vmatprep.subr.bf16.mxu0 0
    %699 = vmatpush1.bf16.msra.mxu0 %v490
    %700 = vmatprep.subr.bf16.mxu0 0
    %701 = vmatpush1.bf16.msra.mxu0 %v489
    %702 = vmatprep.subr.bf16.mxu0 0
    %703 = vmatpush1.bf16.msra.mxu0 %v488
    %704 = vmatprep.subr.bf16.mxu0 0
    %705 = vmatpush2.bf16.msra.mxu0 %v503
    %706 = vmatprep.subr.bf16.mxu0 0
    %707 = vmatpush2.bf16.msra.mxu0 %v502
    %708 = vmatprep.subr.bf16.mxu0 0
    %709 = vmatpush2.bf16.msra.mxu0 %v501
    %710 = vmatprep.subr.bf16.mxu0 0
    %711 = vmatpush2.bf16.msra.mxu0 %v500
    %712 = vmatprep.subr.bf16.mxu0 0
    %713 = vmatpush2.bf16.msra.mxu0 %v499
    %714 = vmatprep.subr.bf16.mxu0 0
    %715 = vmatpush2.bf16.msra.mxu0 %v498
    %716 = vmatprep.subr.bf16.mxu0 0
    %717 = vmatpush2.bf16.msra.mxu0 %v497
    %718 = vmatprep.subr.bf16.mxu0 0
    %719 = vmatpush2.bf16.msra.mxu0 %v496
    %720 = vmatprep.mubr.bf16.mxu0 %v48
    %721 = vmatmul.mubr.bf16.gmra.mxu0 %v47
    %v722 = vpop.f32.mrf.mxu0
    %v723 = vadd.f32 %v683, %v722
    %v724 = vpop.f32.mrf.mxu0
    %v725 = vpop.f32.mrf.mxu0
    %v726 = vpop.f32.mrf.mxu0
    %727 = vdwg.mxu0
    %v728 = vmax.f32 %v723, 0.0
    %v729 = vld [vmem:[%s3] sm:$0xff]
    %v730 = vld [vmem:[%s3 + $0x8] sm:$0xff]
    %v731 = vld [vmem:[%s3 + $0x10] sm:$0xff]
    %v732 = vld [vmem:[%s3 + $0x18] sm:$0xff]
    %v733 = vld [vmem:[%s3 + $0x20] sm:$0xff]
    %v734 = vld [vmem:[%s3 + $0x28] sm:$0xff]
    %v735 = vld [vmem:[%s3 + $0x30] sm:$0xff]
    %v736 = vld [vmem:[%s3 + $0x38] sm:$0xff]
    %v737 = vld [vmem:[%s4] sm:$0x1]
    %v739 = vlaneseq
    %v740 = vshrl.u32 %v739, 7
    %v741 = vsub.s32 0, %v740
    %v742 = vrot.slane %v737, %v741
    %vm744 = vcmask 523264
    %v746 = vsel %vm744, %v728, 0
    %748 = vmatprep.subr.mxu0 0.0
    %749 = vmatpush1.msra.mxu0 0.0
    %750 = vmatprep.subr.mxu0 0.0
    %751 = vmatpush1.msra.mxu0 0.0
    %752 = vmatprep.subr.mxu0 0.0
    %753 = vmatpush1.msra.mxu0 0.0
    %754 = vmatprep.subr.mxu0 0.0
    %755 = vmatpush1.msra.mxu0 0.0
    %756 = vmatprep.subr.mxu0 0.0
    %757 = vmatpush1.msra.mxu0 0.0
    %758 = vmatprep.subr.mxu0 0.0
    %759 = vmatpush1.msra.mxu0 0.0
    %760 = vmatprep.subr.mxu0 0.0
    %761 = vmatpush1.msra.mxu0 0.0
    %762 = vmatprep.subr.mxu0 0.0
    %763 = vmatpush1.msra.mxu0 0.0
    %764 = vmatprep.subr.mxu0 0.0
    %765 = vmatpush1.msra.mxu0 %v736
    %766 = vmatprep.subr.mxu0 0.0
    %767 = vmatpush1.msra.mxu0 %v735
    %768 = vmatprep.subr.mxu0 0.0
    %769 = vmatpush1.msra.mxu0 %v734
    %770 = vmatprep.subr.mxu0 0.0
    %771 = vmatpush1.msra.mxu0 %v733
    %772 = vmatprep.subr.mxu0 0.0
    %773 = vmatpush1.msra.mxu0 %v732
    %774 = vmatprep.subr.mxu0 0.0
    %775 = vmatpush1.msra.mxu0 %v731
    %776 = vmatprep.subr.mxu0 0.0
    %777 = vmatpush1.msra.mxu0 %v730
    %778 = vmatprep.subr.mxu0 0.0
    %779 = vmatpush1.msra.mxu0 %v729
    %780 = vmatprep.subr.mxu0 0.0
    %781 = vmatpush2.msra.mxu0 0.0
    %782 = vmatprep.subr.mxu0 0.0
    %783 = vmatpush2.msra.mxu0 0.0
    %784 = vmatprep.subr.mxu0 0.0
    %785 = vmatpush2.msra.mxu0 0.0
    %786 = vmatprep.subr.mxu0 0.0
    %787 = vmatpush2.msra.mxu0 0.0
    %788 = vmatprep.subr.mxu0 0.0
    %789 = vmatpush2.msra.mxu0 0.0
    %790 = vmatprep.subr.mxu0 0.0
    %791 = vmatpush2.msra.mxu0 0.0
    %792 = vmatprep.subr.mxu0 0.0
    %793 = vmatpush2.msra.mxu0 0.0
    %794 = vmatprep.subr.mxu0 0.0
    %795 = vmatpush2.msra.mxu0 0.0
    %796 = vmatprep.subr.mxu0 0.0
    %797 = vmatpush2.msra.mxu0 0.0
    %798 = vmatprep.subr.mxu0 0.0
    %799 = vmatpush2.msra.mxu0 0.0
    %800 = vmatprep.subr.mxu0 0.0
    %801 = vmatpush2.msra.mxu0 0.0
    %802 = vmatprep.subr.mxu0 0.0
    %803 = vmatpush2.msra.mxu0 0.0
    %804 = vmatprep.subr.mxu0 0.0
    %805 = vmatpush2.msra.mxu0 0.0
    %806 = vmatprep.subr.mxu0 0.0
    %807 = vmatpush2.msra.mxu0 0.0
    %808 = vmatprep.subr.mxu0 0.0
    %809 = vmatpush2.msra.mxu0 0.0
    %810 = vmatprep.subr.mxu0 0.0
    %811 = vmatpush2.msra.mxu0 0.0
    %812 = vmatprep.mubr.f32.mxu0 0.0
    %813 = vmatmul.mubr.f32.gmra.mxu0 %v746
    %v814 = vpop.f32.mrf.mxu0
    %v815 = vadd.f32 %v742, %v814
    %v816 = vpop.f32.mrf.mxu0
    %817 = vdwg.mxu0
    %v818 = vld [vmem:[#allocation2] sm:$0x1]
    %vm819 = vcmp.ge.f32.partialorder %v815, 0.0
    %v821 = vlaneseq
    %v822 = vshrl.u32 %v821, 7
    %v823 = vsub.s32 0, %v822
    %v824 = vrot.slane %v818, %v823
    %825 = vset.pattern.permute.xlu0 0
    %826 = vperm.xlu0 %825, %v824
    %v827 = vpop.permute.xlu0 %826
    %v829 = vmul.f32 %v815, %v827
    %v830 = vsel %vm819, %v815, %v829
    %v831 = vld [vmem:[%s6] sm:$0xff]
    %v832 = vld [vmem:[%s6 + $0x8] sm:$0xff]
    %v833 = vld [vmem:[%s6 + $0x10] sm:$0xff]
    %v834 = vld [vmem:[%s6 + $0x18] sm:$0xff]
    %v835 = vld [vmem:[%s7] sm:$0x1]
    %v837 = vlaneseq
    %v838 = vshrl.u32 %v837, 7
    %v839 = vsub.s32 0, %v838
    %v840 = vrot.slane %v835, %v839
    %vm842 = vcmask 261120
    %v844 = vsel %vm842, %v830, 0
    %846 = vmatprep.subr.mxu0 0.0
    %847 = vmatpush1.msra.mxu0 0.0
    %848 = vmatprep.subr.mxu0 0.0
    %849 = vmatpush1.msra.mxu0 0.0
    %850 = vmatprep.subr.mxu0 0.0
    %851 = vmatpush1.msra.mxu0 0.0
    %852 = vmatprep.subr.mxu0 0.0
    %853 = vmatpush1.msra.mxu0 0.0
    %854 = vmatprep.subr.mxu0 0.0
    %855 = vmatpush1.msra.mxu0 0.0
    %856 = vmatprep.subr.mxu0 0.0
    %857 = vmatpush1.msra.mxu0 0.0
    %858 = vmatprep.subr.mxu0 0.0
    %859 = vmatpush1.msra.mxu0 0.0
    %860 = vmatprep.subr.mxu0 0.0
    %861 = vmatpush1.msra.mxu0 0.0
    %862 = vmatprep.subr.mxu0 0.0
    %863 = vmatpush1.msra.mxu0 0.0
    %864 = vmatprep.subr.mxu0 0.0
    %865 = vmatpush1.msra.mxu0 0.0
    %866 = vmatprep.subr.mxu0 0.0
    %867 = vmatpush1.msra.mxu0 0.0
    %868 = vmatprep.subr.mxu0 0.0
    %869 = vmatpush1.msra.mxu0 0.0
    %870 = vmatprep.subr.mxu0 0.0
    %871 = vmatpush1.msra.mxu0 %v834
    %872 = vmatprep.subr.mxu0 0.0
    %873 = vmatpush1.msra.mxu0 %v833
    %874 = vmatprep.subr.mxu0 0.0
    %875 = vmatpush1.msra.mxu0 %v832
    %876 = vmatprep.subr.mxu0 0.0
    %877 = vmatpush1.msra.mxu0 %v831
    %878 = vmatprep.subr.mxu0 0.0
    %879 = vmatpush2.msra.mxu0 0.0
    %880 = vmatprep.subr.mxu0 0.0
    %881 = vmatpush2.msra.mxu0 0.0
    %882 = vmatprep.subr.mxu0 0.0
    %883 = vmatpush2.msra.mxu0 0.0
    %884 = vmatprep.subr.mxu0 0.0
    %885 = vmatpush2.msra.mxu0 0.0
    %886 = vmatprep.subr.mxu0 0.0
    %887 = vmatpush2.msra.mxu0 0.0
    %888 = vmatprep.subr.mxu0 0.0
    %889 = vmatpush2.msra.mxu0 0.0
    %890 = vmatprep.subr.mxu0 0.0
    %891 = vmatpush2.msra.mxu0 0.0
    %892 = vmatprep.subr.mxu0 0.0
    %893 = vmatpush2.msra.mxu0 0.0
    %894 = vmatprep.subr.mxu0 0.0
    %895 = vmatpush2.msra.mxu0 0.0
    %896 = vmatprep.subr.mxu0 0.0
    %897 = vmatpush2.msra.mxu0 0.0
    %898 = vmatprep.subr.mxu0 0.0
    %899 = vmatpush2.msra.mxu0 0.0
    %900 = vmatprep.subr.mxu0 0.0
    %901 = vmatpush2.msra.mxu0 0.0
    %902 = vmatprep.subr.mxu0 0.0
    %903 = vmatpush2.msra.mxu0 0.0
    %904 = vmatprep.subr.mxu0 0.0
    %905 = vmatpush2.msra.mxu0 0.0
    %906 = vmatprep.subr.mxu0 0.0
    %907 = vmatpush2.msra.mxu0 0.0
    %908 = vmatprep.subr.mxu0 0.0
    %909 = vmatpush2.msra.mxu0 0.0
    %910 = vmatprep.mubr.f32.mxu0 0.0
    %911 = vmatmul.mubr.f32.gmra.mxu0 %v844
    %v912 = vpop.f32.mrf.mxu0
    %v913 = vadd.f32 %v840, %v912
    %v914 = vpop.f32.mrf.mxu0
    %915 = vdwg.mxu0
    %vm916 = vcmask 80896
    %v917 = vsel %vm916, %v913, -inf
    %918 = vmax.xlane.f32.xlu0 %v917
    %v919 = vpop.xlane.xlu0 %918
    %v920 = vsub.f32 %v913, %v919
    %v921 = vmul.f32 %v920, 1.442695
    %v922 = vpow.pop %v921
    %v923 = vsel %vm916, %v922, 0.0
    %924 = vadd.xlane.f32.xlu0 %v923
    %v925 = vpop.xlane.xlu0 %924
    %v926 = vlog2.pop %v925
    %v927 = vmul.f32 %v926, 0.6931472
    %v928 = vsub.f32 %v920, %v927
    %929 = vst.msk [vmem:[#allocation3] sm:$0xff] %vm916, %v928
    // Predicated region
    $region34: #{tpu_custom_call.1} parent=1 // pred_check
      _
    $region35: #{tpu_custom_call.1} parent=1 // pred_check_branch
      %931 = sbr.rel (0) target = $region37
    $region36: #{tpu_custom_call.1} parent=1 // pred_region
      %s933 = ssub.s32 128, 128
      %934 = vsyncadd [#allocation4], %s933
      %s936 = sshll.u32 [#allocation3], 4
      %s937 = int_to_ptr.vmem [resolvable:$true] %s936
      %939 = dma.vmem_to_hbm [thread:$0]  %s937, 128, %s8, [#allocation4]
    $region37: #{tpu_custom_call.1} parent=1 // pred_fallthru
      _
    // Predicated region
    $region38: #{tpu_custom_call.1} parent=1 // pred_check
      _
    $region39: #{tpu_custom_call.1} parent=1 // pred_check_branch
      %941 = sbr.rel (0) target = $region41
    $region40: #{tpu_custom_call.1} parent=1 // pred_region
      %942 = dma.done [#allocation4], 128
    $region41: #{tpu_custom_call.1} parent=1 // pred_fallthru
      _
    %943 = vsyncpa [#allocation4], 1

</llo_original>
